<compile_context>
chip_gen: v7x
topology: tpu7x:2x2x1
jax: 0.10.0
libtpu: 0.0.40
codegen_flags: <defaults>
</compile_context>

<pallas_src>
import functools

import jax
import jax.numpy as jnp
from jax import lax
from jax.experimental import pallas as pl
from jax.experimental.pallas import tpu as pltpu

_LANES = 128


def _cdiv(a, b):
    return (a + b - 1) // b


def _round_up(a, b):
    return _cdiv(a, b) * b


def _device_defaults():
    """(tile_rows, n_splits) tuned per TPU generation."""
    kind = ""
    try:
        kind = jax.devices()[0].device_kind.lower()
    except Exception:
        pass
    if "v7" in kind:
        return 8192, 2          # 2 TensorCores -> shard the reduction
    if "v6" in kind:
        return 8192, 1          # single TC, 32 MiB scoped VMEM default
    return 4096, 1              # v5e (16 MiB scoped VMEM) / unknown: conservative


def _std_mse_jax(x, y):
    """Plain-JAX path (reference semantics) for tiny inputs."""
    xf = x.astype(jnp.float32)
    yf = y.astype(jnp.float32)
    std = (jnp.std(xf, ddof=1) - jnp.std(yf, ddof=1)) ** 2
    mse = jnp.mean((xf - yf) ** 2)
    return std * mse


def _std_mse_kernel(x_ref, y_ref, o_ref, *, tr, ch, rows, tiles_per_split,
                    needs_mask):
    """Accumulate per-lane partial stats for one split of the data.

    o_ref: (1, 5, 8, 128) f32, resident in VMEM across the inner grid axis:
           [sum x, sum x^2, sum y, sum y^2, sum (x-y)^2]
    """
    s = pl.program_id(0)
    j = pl.program_id(1)

    @pl.when(j == 0)
    def _init():
        o_ref[...] = jnp.zeros_like(o_ref)

    # First *logical* global row of this tile (used only for masking).
    row0 = (s * tiles_per_split + j) * tr
    groups = ch // 8

    if needs_mask:
        # Hoisted out of the loop (JAX does not CSE broadcasts).
        rid = lax.broadcasted_iota(jnp.int32, (8, _LANES), 0)

    def body(i, carry):
        sx, sxx, sy, syy, sd2 = carry
        base = pl.multiple_of(i * ch, ch)
        # One chunk load per input in its native dtype, widened in-register.
        xc = x_ref[pl.ds(base, ch), :].astype(jnp.float32).reshape(groups, 8, _LANES)
        yc = y_ref[pl.ds(base, ch), :].astype(jnp.float32).reshape(groups, 8, _LANES)
        for g in range(groups):           # static unroll: one vreg pair / step
            xk = xc[g]
            yk = yc[g]
            if needs_mask:
                valid = (row0 + base + g * 8 + rid) < rows
                xk = jnp.where(valid, xk, 0.0)
                yk = jnp.where(valid, yk, 0.0)
            d = xk - yk
            sx = sx + xk
            sxx = sxx + xk * xk
            sy = sy + yk
            syy = syy + yk * yk
            sd2 = sd2 + d * d
        return sx, sxx, sy, syy, sd2

    zero = jnp.zeros((8, _LANES), jnp.float32)
    sx, sxx, sy, syy, sd2 = lax.fori_loop(
        0, tr // ch, body, (zero, zero, zero, zero, zero))

    o_ref[0, 0] += sx
    o_ref[0, 1] += sxx
    o_ref[0, 2] += sy
    o_ref[0, 3] += syy
    o_ref[0, 4] += sd2


def std_mse(x, y, *, tile_rows=None, n_splits=None, vmem_limit_bytes=None,
            use_pallas=None):
    assert x.shape == y.shape, (x.shape, y.shape)
    n = x.size
    out_dtype = jnp.result_type(x.dtype, y.dtype)

    if n < 2:
        # torch.std with correction=1 of a single element is NaN.
        return jnp.full((), jnp.nan, out_dtype)

    if use_pallas is None:
        use_pallas = n >= (1 << 18)       # below ~1 MiB the launch dominates
    rows = n // _LANES
    if (not use_pallas) or rows == 0:
        return _std_mse_jax(x, y).astype(out_dtype)

    def_tr, def_splits = _device_defaults()
    tile_rows = def_tr if tile_rows is None else tile_rows
    n_splits = def_splits if n_splits is None else n_splits

    itemsize = x.dtype.itemsize
    pack = {4: 8, 2: 16, 1: 32}.get(itemsize, 8)   # min sublane rows per dtype

    xf = x.reshape(-1)
    yf = y.reshape(-1)
    main = rows * _LANES
    if main != n:
        # <128-element ragged tail reduced in plain JAX.  (Only this rare
        # n % 128 != 0 case pays for one extra copy of the prefix.)
        xt = xf[main:].astype(jnp.float32)
        yt = yf[main:].astype(jnp.float32)
        dt = xt - yt
        tail_stats = jnp.stack([jnp.sum(xt), jnp.sum(xt * xt),
                                jnp.sum(yt), jnp.sum(yt * yt),
                                jnp.sum(dt * dt)])
        x2 = xf[:main].reshape(rows, _LANES)
        y2 = yf[:main].reshape(rows, _LANES)
    else:
        tail_stats = jnp.zeros((5,), jnp.float32)
        x2 = xf.reshape(rows, _LANES)      # contiguous reshape: zero HBM copy
        y2 = yf.reshape(rows, _LANES)

    # Tile rows: as large as the generation allows, multiple of 64 so a 64-row
    # inner chunk works for every dtype packing; small inputs get one
    # right-sized tile (respecting the per-dtype minimum sublane tile).
    desired = _cdiv(rows, n_splits)
    if desired <= 64:
        tr = _round_up(desired, pack)
    else:
        tr = max(64, min(_round_up(tile_rows, 64), _round_up(desired, 64)))
    ch = min(tr, 64)

    tiles_total = _cdiv(rows, tr)
    tiles_per_split = _cdiv(tiles_total, n_splits)
    needs_mask = (n_splits * tiles_per_split * tr) != rows

    def in_map(s, j):
        # Clamp so logically out-of-range tiles never DMA out of bounds; their
        # contribution is zeroed by the in-kernel mask.
        return (jnp.minimum(s * tiles_per_split + j, tiles_total - 1), 0)

    kernel = functools.partial(
        _std_mse_kernel, tr=tr, ch=ch, rows=rows,
        tiles_per_split=tiles_per_split, needs_mask=needs_mask)

    partials = pl.pallas_call(
        kernel,
        out_shape=jax.ShapeDtypeStruct((n_splits, 5, 8, _LANES), jnp.float32),
        grid_spec=pltpu.PrefetchScalarGridSpec(
            num_scalar_prefetch=0,
            grid=(n_splits, tiles_per_split),
            in_specs=[
                pl.BlockSpec((tr, _LANES), in_map),
                pl.BlockSpec((tr, _LANES), in_map),
            ],
            out_specs=pl.BlockSpec((1, 5, 8, _LANES),
                                   lambda s, j: (s, 0, 0, 0)),
        ),
        compiler_params=pltpu.CompilerParams(
            dimension_semantics=("parallel", "arbitrary"),
            vmem_limit_bytes=vmem_limit_bytes,
        ),
        cost_estimate=pl.CostEstimate(
            flops=9 * main,
            transcendentals=0,
            bytes_accessed=2 * main * itemsize + n_splits * 5 * 8 * _LANES * 4,
        ),
    )(x2, y2)

    # Tiny final combine in plain JAX: cross-lane tree-reduce + scalar formula.
    stats = jnp.sum(partials, axis=(0, 2, 3)) + tail_stats   # (5,)
    s_x, s_xx, s_y, s_yy, s_d2 = (stats[i] for i in range(5))

    nf = jnp.float32(n)
    denom = jnp.float32(n - 1)
    # Single-pass variance; per-lane tree accumulation keeps f32 rounding
    # small.  (Add a coarse mean shift here if very high-mean inputs expected.)
    var_x = (s_xx - s_x * s_x / nf) / denom
    var_y = (s_yy - s_y * s_y / nf) / denom
    std_x = jnp.sqrt(jnp.maximum(var_x, 0.0))
    std_y = jnp.sqrt(jnp.maximum(var_y, 0.0))
    mse = s_d2 / nf
    return ((std_x - std_y) ** 2 * mse).astype(out_dtype)


if __name__ == "__main__":
    key = jax.random.PRNGKey(0)
    kx, ky = jax.random.split(key)
    # NCHW-ish shapes: batch=2, channels=4, spatial=16x16
    x = jax.random.normal(kx, (2, 4, 16, 16), dtype=jnp.float32)
    y = jax.random.normal(ky, (2, 4, 16, 16), dtype=jnp.float32) * 1.5 + 0.3

    # Force the Pallas path even though this test input is tiny.
    out = std_mse(x, y, use_pallas=True)
    jax.block_until_ready(out)

    # reference (pure JAX) for sanity check
    std_ref = (jnp.std(x, ddof=1) - jnp.std(y, ddof=1)) ** 2
    mse_ref = jnp.mean((x - y) ** 2)
    ref = std_ref * mse_ref
    assert jnp.allclose(out, ref, rtol=1e-4, atol=1e-6), (out, ref)

    print("KERNEL_OK")
</pallas_src>

<mosaic_0001>
module attributes {stable_mosaic.version = 11 : i64} {
  func.func @_std_mse_kernel(%arg0: i32, %arg1: i32, %arg2: memref<16x128xf32, #tpu.memory_space<vmem>>, %arg3: memref<16x128xf32, #tpu.memory_space<vmem>>, %arg4: memref<1x5x8x128xf32, #tpu.memory_space<vmem>>) attributes {dimension_semantics = [#tpu.dimension_semantics<parallel>, #tpu.dimension_semantics<arbitrary>], iteration_bounds = array<i64: 1, 1>, scalar_prefetch = 0 : i64, scratch_operands = 0 : i64, tpu.core_type = #tpu.core_type<tc>, window_params = [{transform_indices = @transform_0, window_bounds = array<i64: 16, 128>}, {transform_indices = @transform_1, window_bounds = array<i64: 16, 128>}, {transform_indices = @transform_2, window_bounds = array<i64: 1, 5, 8, 128>}]} {
    %c0_i32 = arith.constant 0 : i32
    %0 = arith.cmpi eq, %arg1, %c0_i32 : i32
    %1 = arith.extui %0 : i1 to i32
    %c0_i32_0 = arith.constant 0 : i32
    %2 = arith.cmpi ne, %1, %c0_i32_0 : i32
    scf.if %2 {
      %cst_39 = arith.constant 0.000000e+00 : f32
      %68 = vector.broadcast %cst_39 : f32 to vector<1x5x8x128xf32>
      %c0_40 = arith.constant 0 : index
      %c0_41 = arith.constant 0 : index
      %c0_42 = arith.constant 0 : index
      %c0_43 = arith.constant 0 : index
      %69 = vector.load %arg4[%c0_40, %c0_41, %c0_42, %c0_43] : memref<1x5x8x128xf32, #tpu.memory_space<vmem>>, vector<1x5x8x128xf32>
      tpu.vector_store %arg4[%c0_40, %c0_41, %c0_42, %c0_43], %68 {strides = array<i32>} : memref<1x5x8x128xf32, #tpu.memory_space<vmem>>, vector<1x5x8x128xf32>,
    } else {
    }
    %cst = arith.constant 0.000000e+00 : f32
    %3 = vector.broadcast %cst : f32 to vector<8x128xf32>
    %c0_i32_1 = arith.constant 0 : i32
    %c16_i32 = arith.constant 16 : i32
    %4 = arith.muli %c0_i32_1, %c16_i32 : i32
    %5 = tpu.assume_multiple %4, 16 : i32
    %6 = arith.index_cast %5 : i32 to index
    %c0 = arith.constant 0 : index
    %7 = vector.load %arg2[%6, %c0] : memref<16x128xf32, #tpu.memory_space<vmem>>, vector<16x128xf32>
    %8 = vector.shape_cast %7 : vector<16x128xf32> to vector<2x8x128xf32>
    %9 = arith.index_cast %5 : i32 to index
    %c0_2 = arith.constant 0 : index
    %10 = vector.load %arg3[%9, %c0_2] : memref<16x128xf32, #tpu.memory_space<vmem>>, vector<16x128xf32>
    %11 = vector.shape_cast %10 : vector<16x128xf32> to vector<2x8x128xf32>
    %12 = vector.extract_strided_slice %8 {offsets = [0, 0, 0], sizes = [1, 8, 128], strides = [1, 1, 1]} : vector<2x8x128xf32> to vector<1x8x128xf32>
    %13 = vector.shape_cast %12 : vector<1x8x128xf32> to vector<8x128xf32>
    %14 = vector.extract_strided_slice %11 {offsets = [0, 0, 0], sizes = [1, 8, 128], strides = [1, 1, 1]} : vector<2x8x128xf32> to vector<1x8x128xf32>
    %15 = vector.shape_cast %14 : vector<1x8x128xf32> to vector<8x128xf32>
    %16 = arith.subf %13, %15 : vector<8x128xf32>
    %17 = arith.addf %3, %13 : vector<8x128xf32>
    %18 = arith.mulf %13, %13 : vector<8x128xf32>
    %19 = arith.addf %3, %18 : vector<8x128xf32>
    %20 = arith.addf %3, %15 : vector<8x128xf32>
    %21 = arith.mulf %15, %15 : vector<8x128xf32>
    %22 = arith.addf %3, %21 : vector<8x128xf32>
    %23 = arith.mulf %16, %16 : vector<8x128xf32>
    %24 = arith.addf %3, %23 : vector<8x128xf32>
    %25 = vector.extract_strided_slice %8 {offsets = [1, 0, 0], sizes = [1, 8, 128], strides = [1, 1, 1]} : vector<2x8x128xf32> to vector<1x8x128xf32>
    %26 = vector.shape_cast %25 : vector<1x8x128xf32> to vector<8x128xf32>
    %27 = vector.extract_strided_slice %11 {offsets = [1, 0, 0], sizes = [1, 8, 128], strides = [1, 1, 1]} : vector<2x8x128xf32> to vector<1x8x128xf32>
    %28 = vector.shape_cast %27 : vector<1x8x128xf32> to vector<8x128xf32>
    %29 = arith.subf %26, %28 : vector<8x128xf32>
    %30 = arith.addf %17, %26 : vector<8x128xf32>
    %31 = arith.mulf %26, %26 : vector<8x128xf32>
    %32 = arith.addf %19, %31 : vector<8x128xf32>
    %33 = arith.addf %20, %28 : vector<8x128xf32>
    %34 = arith.mulf %28, %28 : vector<8x128xf32>
    %35 = arith.addf %22, %34 : vector<8x128xf32>
    %36 = arith.mulf %29, %29 : vector<8x128xf32>
    %37 = arith.addf %24, %36 : vector<8x128xf32>
    %c1_i32 = arith.constant 1 : i32
    %c0_3 = arith.constant 0 : index
    %c0_4 = arith.constant 0 : index
    %c0_5 = arith.constant 0 : index
    %c0_6 = arith.constant 0 : index
    %38 = vector.load %arg4[%c0_3, %c0_4, %c0_5, %c0_6] : memref<1x5x8x128xf32, #tpu.memory_space<vmem>>, vector<1x1x8x128xf32>
    %39 = vector.shape_cast %38 : vector<1x1x8x128xf32> to vector<8x128xf32>
    %40 = arith.addf %39, %30 : vector<8x128xf32>
    %c0_7 = arith.constant 0 : index
    %c0_8 = arith.constant 0 : index
    %c0_9 = arith.constant 0 : index
    %c0_10 = arith.constant 0 : index
    %41 = vector.load %arg4[%c0_7, %c0_8, %c0_9, %c0_10] : memref<1x5x8x128xf32, #tpu.memory_space<vmem>>, vector<1x1x8x128xf32>
    %42 = vector.shape_cast %41 : vector<1x1x8x128xf32> to vector<8x128xf32>
    %43 = vector.shape_cast %40 : vector<8x128xf32> to vector<1x1x8x128xf32>
    tpu.vector_store %arg4[%c0_7, %c0_8, %c0_9, %c0_10], %43 {strides = array<i32>} : memref<1x5x8x128xf32, #tpu.memory_space<vmem>>, vector<1x1x8x128xf32>,
    %c0_11 = arith.constant 0 : index
    %c1 = arith.constant 1 : index
    %c0_12 = arith.constant 0 : index
    %c0_13 = arith.constant 0 : index
    %44 = vector.load %arg4[%c0_11, %c1, %c0_12, %c0_13] : memref<1x5x8x128xf32, #tpu.memory_space<vmem>>, vector<1x1x8x128xf32>
    %45 = vector.shape_cast %44 : vector<1x1x8x128xf32> to vector<8x128xf32>
    %46 = arith.addf %45, %32 : vector<8x128xf32>
    %c0_14 = arith.constant 0 : index
    %c1_15 = arith.constant 1 : index
    %c0_16 = arith.constant 0 : index
    %c0_17 = arith.constant 0 : index
    %47 = vector.load %arg4[%c0_14, %c1_15, %c0_16, %c0_17] : memref<1x5x8x128xf32, #tpu.memory_space<vmem>>, vector<1x1x8x128xf32>
    %48 = vector.shape_cast %47 : vector<1x1x8x128xf32> to vector<8x128xf32>
    %49 = vector.shape_cast %46 : vector<8x128xf32> to vector<1x1x8x128xf32>
    tpu.vector_store %arg4[%c0_14, %c1_15, %c0_16, %c0_17], %49 {strides = array<i32>} : memref<1x5x8x128xf32, #tpu.memory_space<vmem>>, vector<1x1x8x128xf32>,
    %c0_18 = arith.constant 0 : index
    %c2 = arith.constant 2 : index
    %c0_19 = arith.constant 0 : index
    %c0_20 = arith.constant 0 : index
    %50 = vector.load %arg4[%c0_18, %c2, %c0_19, %c0_20] : memref<1x5x8x128xf32, #tpu.memory_space<vmem>>, vector<1x1x8x128xf32>
    %51 = vector.shape_cast %50 : vector<1x1x8x128xf32> to vector<8x128xf32>
    %52 = arith.addf %51, %33 : vector<8x128xf32>
    %c0_21 = arith.constant 0 : index
    %c2_22 = arith.constant 2 : index
    %c0_23 = arith.constant 0 : index
    %c0_24 = arith.constant 0 : index
    %53 = vector.load %arg4[%c0_21, %c2_22, %c0_23, %c0_24] : memref<1x5x8x128xf32, #tpu.memory_space<vmem>>, vector<1x1x8x128xf32>
    %54 = vector.shape_cast %53 : vector<1x1x8x128xf32> to vector<8x128xf32>
    %55 = vector.shape_cast %52 : vector<8x128xf32> to vector<1x1x8x128xf32>
    tpu.vector_store %arg4[%c0_21, %c2_22, %c0_23, %c0_24], %55 {strides = array<i32>} : memref<1x5x8x128xf32, #tpu.memory_space<vmem>>, vector<1x1x8x128xf32>,
    %c0_25 = arith.constant 0 : index
    %c3 = arith.constant 3 : index
    %c0_26 = arith.constant 0 : index
    %c0_27 = arith.constant 0 : index
    %56 = vector.load %arg4[%c0_25, %c3, %c0_26, %c0_27] : memref<1x5x8x128xf32, #tpu.memory_space<vmem>>, vector<1x1x8x128xf32>
    %57 = vector.shape_cast %56 : vector<1x1x8x128xf32> to vector<8x128xf32>
    %58 = arith.addf %57, %35 : vector<8x128xf32>
    %c0_28 = arith.constant 0 : index
    %c3_29 = arith.constant 3 : index
    %c0_30 = arith.constant 0 : index
    %c0_31 = arith.constant 0 : index
    %59 = vector.load %arg4[%c0_28, %c3_29, %c0_30, %c0_31] : memref<1x5x8x128xf32, #tpu.memory_space<vmem>>, vector<1x1x8x128xf32>
    %60 = vector.shape_cast %59 : vector<1x1x8x128xf32> to vector<8x128xf32>
    %61 = vector.shape_cast %58 : vector<8x128xf32> to vector<1x1x8x128xf32>
    tpu.vector_store %arg4[%c0_28, %c3_29, %c0_30, %c0_31], %61 {strides = array<i32>} : memref<1x5x8x128xf32, #tpu.memory_space<vmem>>, vector<1x1x8x128xf32>,
    %c0_32 = arith.constant 0 : index
    %c4 = arith.constant 4 : index
    %c0_33 = arith.constant 0 : index
    %c0_34 = arith.constant 0 : index
    %62 = vector.load %arg4[%c0_32, %c4, %c0_33, %c0_34] : memref<1x5x8x128xf32, #tpu.memory_space<vmem>>, vector<1x1x8x128xf32>
    %63 = vector.shape_cast %62 : vector<1x1x8x128xf32> to vector<8x128xf32>
    %64 = arith.addf %63, %37 : vector<8x128xf32>
    %c0_35 = arith.constant 0 : index
    %c4_36 = arith.constant 4 : index
    %c0_37 = arith.constant 0 : index
    %c0_38 = arith.constant 0 : index
    %65 = vector.load %arg4[%c0_35, %c4_36, %c0_37, %c0_38] : memref<1x5x8x128xf32, #tpu.memory_space<vmem>>, vector<1x1x8x128xf32>
    %66 = vector.shape_cast %65 : vector<1x1x8x128xf32> to vector<8x128xf32>
    %67 = vector.shape_cast %64 : vector<8x128xf32> to vector<1x1x8x128xf32>
    tpu.vector_store %arg4[%c0_35, %c4_36, %c0_37, %c0_38], %67 {strides = array<i32>} : memref<1x5x8x128xf32, #tpu.memory_space<vmem>>, vector<1x1x8x128xf32>,
    return
  }
  func.func @transform_0(%arg0: i32, %arg1: i32) -> (i32, i32) {
    %c1_i32 = arith.constant 1 : i32
    %0 = arith.muli %arg0, %c1_i32 : i32
    %1 = arith.addi %0, %arg1 : i32
    %c0_i32 = arith.constant 0 : i32
    %2 = arith.minsi %1, %c0_i32 : i32
    %c0_i32_0 = arith.constant 0 : i32
    %c0_i32_1 = arith.constant 0 : i32
    return %2, %c0_i32_0 : i32, i32
  }
  func.func @transform_1(%arg0: i32, %arg1: i32) -> (i32, i32) {
    %c1_i32 = arith.constant 1 : i32
    %0 = arith.muli %arg0, %c1_i32 : i32
    %1 = arith.addi %0, %arg1 : i32
    %c0_i32 = arith.constant 0 : i32
    %2 = arith.minsi %1, %c0_i32 : i32
    %c0_i32_0 = arith.constant 0 : i32
    %c0_i32_1 = arith.constant 0 : i32
    return %2, %c0_i32_0 : i32, i32
  }
  func.func @transform_2(%arg0: i32, %arg1: i32) -> (i32, i32, i32, i32) {
    %c0_i32 = arith.constant 0 : i32
    %c0_i32_0 = arith.constant 0 : i32
    %c0_i32_1 = arith.constant 0 : i32
    %c0_i32_2 = arith.constant 0 : i32
    return %arg0, %c0_i32, %c0_i32_0, %c0_i32_1 : i32, i32, i32, i32
  }
}

</mosaic_0001>

<llo_original>
// kernel: tpu_custom_call.1
$region0: #{tpu_custom_call.1}
  #allocation0 [shape = 'u32[]', space=smem, size = 0x4, offset = 0x4, fixed_abs, tag = 'smem constant byte address 0x4 - core index']
  #allocation1 [shape = 'u32[144,128]{1,0:T(1,128)}', space=vmem, size = 0x12000, scoped, tag = 'internal scratch']
  %s0 = inlined_call_operand.hbm [shape: f32[16,128], index: 0, kind: input, shape index: {}]
  %s1 = inlined_call_operand.hbm [shape: f32[16,128], index: 1, kind: input, shape index: {}]
  %s2 = inlined_call_operand.hbm [shape: f32[1,5,8,128], index: 2, kind: output, shape index: {}]
  %s3 = sld [smem:[#allocation0]]
  $region30: #{tpu_custom_call.1} parent=0
    _
  %s5 = ssub.s32 1, %s3
  %s6 = scalar_select 0, %s5, %s3
  $region1: #{tpu_custom_call.1} parent=0
    #allocation2 [shape = 'u8[8192]{0}', space=vmem, size = 0x2000, scoped, tag = 'input window, operand 0, single buffered']
    #allocation3 [shape = 's32[1]{0}', space=sflag, size = 0x4, scoped, tag = 'scoped memory for tpu_custom_call.1']
    #allocation4 [shape = 's32[1]{0}', space=sflag, size = 0x4, scoped, tag = 'scoped memory for tpu_custom_call.1']
    #allocation5 [shape = 'u8[8192]{0}', space=vmem, size = 0x2000, scoped, tag = 'input window, operand 1, single buffered']
    #allocation6 [shape = 's32[1]{0}', space=sflag, size = 0x4, scoped, tag = 'scoped memory for tpu_custom_call.1']
    #allocation7 [shape = 'u8[20480]{0}', space=vmem, size = 0x5000, scoped, tag = 'output window, operand 0, single buffered']
    %7 = vsyncpa [#allocation3], 0
    %8 = vsyncpa [#allocation6], 0
    %9 = vsyncpa [#allocation4], 0
    // Predicated region
    $region2: #{tpu_custom_call.1} parent=1 // pred_check
      _
    $region3: #{tpu_custom_call.1} parent=1 // pred_check_branch
      %11 = sbr.rel (0) target = $region5
    $region4: #{tpu_custom_call.1} parent=1 // pred_region
      %s12 = sadd.s32 0, 0
      %p13 = scmp.lt.s32.totalorder %s12, 0
      %s14 = scalar_select %p13, %s12, 0
      %s15 = smul.u32 2, %s14
      %s17 = ssub.s32 256, 256
      %18 = vsyncadd [#allocation3], %s17
      %s19 = smul.addr %s15, 128
      %s20 = scalar_lea.hbm %s0, %s19
      %s21 = sshll.u32 [#allocation2], 4
      %s22 = int_to_ptr.vmem [resolvable:$true] %s21
      %27 = dma.hbm_to_vmem [thread:$0]  %s20, 256, %s22, [#allocation3], 128, 128, 8
    $region5: #{tpu_custom_call.1} parent=1 // pred_fallthru
      _
    // Predicated region
    $region6: #{tpu_custom_call.1} parent=1 // pred_check
      _
    $region7: #{tpu_custom_call.1} parent=1 // pred_check_branch
      %29 = sbr.rel (0) target = $region9
    $region8: #{tpu_custom_call.1} parent=1 // pred_region
      %s30 = sadd.s32 0, 0
      %p31 = scmp.lt.s32.totalorder %s30, 0
      %s32 = scalar_select %p31, %s30, 0
      %s33 = smul.u32 2, %s32
      %s35 = ssub.s32 256, 256
      %36 = vsyncadd [#allocation6], %s35
      %s37 = smul.addr %s33, 128
      %s38 = scalar_lea.hbm %s1, %s37
      %s39 = sshll.u32 [#allocation5], 4
      %s40 = int_to_ptr.vmem [resolvable:$true] %s39
      %45 = dma.hbm_to_vmem [thread:$0]  %s38, 256, %s40, [#allocation6], 128, 128, 8
    $region9: #{tpu_custom_call.1} parent=1 // pred_fallthru
      _
    // Predicated region
    $region10: #{tpu_custom_call.1} parent=1 // pred_check
      _
    $region11: #{tpu_custom_call.1} parent=1 // pred_check_branch
      %47 = sbr.rel (0) target = $region13
    $region12: #{tpu_custom_call.1} parent=1 // pred_region
      %48 = dma.done [#allocation3], 256
    $region13: #{tpu_custom_call.1} parent=1 // pred_fallthru
      _
    // Predicated region
    $region14: #{tpu_custom_call.1} parent=1 // pred_check
      _
    $region15: #{tpu_custom_call.1} parent=1 // pred_check_branch
      %50 = sbr.rel (0) target = $region17
    $region16: #{tpu_custom_call.1} parent=1 // pred_region
      %51 = dma.done [#allocation6], 256
    $region17: #{tpu_custom_call.1} parent=1 // pred_fallthru
      _
    %s52 = sadd.s32 0, 0
    %p53 = scmp.lt.s32.totalorder %s52, 0
    %s54 = scalar_select %p53, %s52, 0
    %s55 = smul.u32 2, %s54
    %s56 = sadd.s32 0, 0
    %p57 = scmp.lt.s32.totalorder %s56, 0
    %s58 = scalar_select %p57, %s56, 0
    %s59 = smul.u32 2, %s58
    %p60 = scmp.eq.s32.totalorder 0, 0
    // Predicated region
    $region18: #{tpu_custom_call.1} parent=1 // pred_check
      %p61 = pneg %p60
    $region19: #{tpu_custom_call.1} parent=1 // pred_check_branch
      %63 = sbr.rel (%p61) target = $region21
    $region20: #{tpu_custom_call.1} parent=1 // pred_region
      %64 = vst [vmem:[#allocation7] sm:$0xff] 0.0
      %65 = vst [vmem:[#allocation7 + $0x8] sm:$0xff] 0.0
      %66 = vst [vmem:[#allocation7 + $0x10] sm:$0xff] 0.0
      %67 = vst [vmem:[#allocation7 + $0x18] sm:$0xff] 0.0
      %68 = vst [vmem:[#allocation7 + $0x20] sm:$0xff] 0.0
    $region21: #{tpu_custom_call.1} parent=1 // pred_fallthru
      _
    %v69 = vld [vmem:[#allocation2] sm:$0xff]
    %v70 = vld [vmem:[#allocation2 + $0x8] sm:$0xff]
    %v71 = vld [vmem:[#allocation5] sm:$0xff]
    %v72 = vld [vmem:[#allocation5 + $0x8] sm:$0xff]
    %v73 = vsub.f32 %v69, %v71
    %v74 = vadd.f32 %v69, 0.0
    %v75 = vmul.f32 %v69, %v69
    %v76 = vadd.f32 %v75, 0.0
    %v77 = vadd.f32 %v71, 0.0
    %v78 = vmul.f32 %v71, %v71
    %v79 = vadd.f32 %v78, 0.0
    %v80 = vmul.f32 %v73, %v73
    %v81 = vadd.f32 %v80, 0.0
    %v82 = vsub.f32 %v70, %v72
    %v83 = vadd.f32 %v74, %v70
    %v84 = vmul.f32 %v70, %v70
    %v85 = vadd.f32 %v76, %v84
    %v86 = vadd.f32 %v77, %v72
    %v87 = vmul.f32 %v72, %v72
    %v88 = vadd.f32 %v79, %v87
    %v89 = vmul.f32 %v82, %v82
    %v90 = vadd.f32 %v81, %v89
    %v91 = vld [vmem:[#allocation7] sm:$0xff]
    %v92 = vadd.f32 %v91, %v83
    %93 = vst [vmem:[#allocation7] sm:$0xff] %v92
    %s94 = scalar_lea.vmem [#allocation7], 8
    %v95 = vld [vmem:[%s94] sm:$0xff]
    %v96 = vadd.f32 %v95, %v85
    %97 = vst [vmem:[%s94] sm:$0xff] %v96
    %s98 = scalar_lea.vmem [#allocation7], 16
    %v99 = vld [vmem:[%s98] sm:$0xff]
    %v100 = vadd.f32 %v99, %v86
    %101 = vst [vmem:[%s98] sm:$0xff] %v100
    %s102 = scalar_lea.vmem [#allocation7], 24
    %v103 = vld [vmem:[%s102] sm:$0xff]
    %v104 = vadd.f32 %v103, %v88
    %105 = vst [vmem:[%s102] sm:$0xff] %v104
    %s106 = scalar_lea.vmem [#allocation7], 32
    %v107 = vld [vmem:[%s106] sm:$0xff]
    %v108 = vadd.f32 %v107, %v90
    %109 = vst [vmem:[%s106] sm:$0xff] %v108
    // Predicated region
    $region22: #{tpu_custom_call.1} parent=1 // pred_check
      _
    $region23: #{tpu_custom_call.1} parent=1 // pred_check_branch
      %111 = sbr.rel (0) target = $region25
    $region24: #{tpu_custom_call.1} parent=1 // pred_region
      %s113 = ssub.s32 640, 640
      %114 = vsyncadd [#allocation4], %s113
      %s115 = sshll.u32 [#allocation7], 4
      %s116 = int_to_ptr.vmem [resolvable:$true] %s115
      %121 = dma.vmem_to_hbm [thread:$0]  %s116, 640, %s2, [#allocation4], 128, 128, 8
    $region25: #{tpu_custom_call.1} parent=1 // pred_fallthru
      _
    // Predicated region
    $region26: #{tpu_custom_call.1} parent=1 // pred_check
      _
    $region27: #{tpu_custom_call.1} parent=1 // pred_check_branch
      %123 = sbr.rel (0) target = $region29
    $region28: #{tpu_custom_call.1} parent=1 // pred_region
      %124 = dma.done [#allocation4], 640
    $region29: #{tpu_custom_call.1} parent=1 // pred_fallthru
      _
    %125 = vsyncpa [#allocation3], 1
    %126 = vsyncpa [#allocation6], 1
    %127 = vsyncpa [#allocation4], 1

</llo_original>
